<compile_context>
chip_gen: v5e
topology: v5e:2x2
jax: 0.10.0
libtpu: 0.0.40
codegen_flags: <defaults>
</compile_context>

<pallas_src>
import functools

import jax
import jax.numpy as jnp
from jax import lax
from jax.experimental import pallas as pl
from jax.experimental.pallas import tpu as pltpu

LANE = 128


def _round_up(x, m):
    return (x + m - 1) // m * m


def _tile_padded_bytes(shape, dtype):
    """VMEM footprint of an array after (8*packing, 128) tiling of the last 2 dims."""
    itemsize = jnp.dtype(dtype).itemsize
    packing = max(1, 4 // itemsize)
    shape = tuple(int(d) for d in shape)
    if len(shape) < 2:
        shape = (1,) * (2 - len(shape)) + shape
    lead = 1
    for d in shape[:-2]:
        lead *= d
    sub = -(-shape[-2] // (8 * packing)) * (8 * packing)
    lane = -(-shape[-1] // LANE) * LANE
    return lead * sub * lane * itemsize


def conv_pool_kernel(x_ref, wc_ref, bc_ref, pool_ref, *, hw, tq, inv_hw, needs_mask):
    """im2col 3x3 conv + bias + ReLU + global-avg-pool (accumulated over row chunks).

    x_ref    : [tq, 9*C_in]        bf16  im2col patches for this (image, chunk)
    wc_ref   : [9*C_in, C_hid_p]   bf16  conv weight, rows in (kh, kw, c_in) order
    bc_ref   : [1, C_hid_p]        f32
    pool_ref : [1, C_hid_p]        f32   output block, resident across the chunk axis
    """
    ci = pl.program_id(1)

    @pl.when(ci == 0)
    def _():
        pool_ref[...] = jnp.zeros_like(pool_ref)

    # Single fat-K MXU matmul (bf16 inputs, f32 accumulation).
    acc = jnp.dot(x_ref[...], wc_ref[...], preferred_element_type=jnp.float32)
    hact = jnp.maximum(acc + bc_ref[...], 0.0)                   # bias + ReLU
    if needs_mask:                                               # static (trace-time) gate
        rows = ci * tq + lax.broadcasted_iota(jnp.int32, (tq, 1), 0)
        hact = jnp.where(rows < hw, hact, 0.0)                   # zero padded rows
    pool_ref[...] += jnp.sum(hact, axis=0, keepdims=True)

    @pl.when(ci == pl.num_programs(1) - 1)
    def _():
        pool_ref[...] = pool_ref[...] * inv_hw                   # divide once


def head_kernel(p_ref, wh_ref, bh_ref, o_ref):
    """Batched classifier head: [B, C_hid_p] @ [C_hid_p, L_p] + bias."""
    o_ref[...] = jnp.dot(p_ref[...], wh_ref[...],
                         preferred_element_type=jnp.float32) + bh_ref[...]


def image_model_forward(image_nchw, params, *, chunk_rows_target=512):
    """image_nchw: [B, C_in, H, W] f32 (PyTorch layout).  Returns [B, num_labels]."""
    wc, bc, wh, bh = params
    b, c_in, h, w = image_nchw.shape
    k = 9 * c_in
    c_hid = wc.shape[1]
    num_labels = wh.shape[1]
    c_hid_p = _round_up(c_hid, LANE)
    l_p = _round_up(num_labels, LANE)
    hw = h * w

    # ---------- plain-JAX glue: NHWC, zero-pad, lane-packed bf16 im2col ----------
    x_nhwc = jnp.transpose(image_nchw, (0, 2, 3, 1)).astype(jnp.float32)
    x_pad = jnp.pad(x_nhwc, ((0, 0), (1, 1), (1, 1), (0, 0)))
    taps = [x_pad[:, dy:dy + h, dx:dx + w, :] for dy in range(3) for dx in range(3)]
    patches = jnp.stack(taps, axis=3).reshape(b, hw, k).astype(jnp.bfloat16)

    # Row chunking: tq rows/grid-step (multiple of 8); rows padded to a tq multiple.
    tq = min(_round_up(chunk_rows_target, 8), _round_up(hw, 8))
    hw_p = _round_up(hw, tq)
    if hw_p != hw:
        patches = jnp.pad(patches, ((0, 0), (0, hw_p - hw), (0, 0)))
    n_chunks = hw_p // tq
    needs_mask = hw_p != hw

    # Lane-dense, zero-filled parameter padding (bf16 weights, f32 biases).
    wc_p = jnp.zeros((k, c_hid_p), jnp.bfloat16).at[:, :c_hid].set(wc.astype(jnp.bfloat16))
    bc_p = jnp.zeros((1, c_hid_p), jnp.float32).at[:, :c_hid].set(bc[None, :])
    wh_p = jnp.zeros((c_hid_p, l_p), jnp.bfloat16).at[:c_hid, :num_labels].set(
        wh.astype(jnp.bfloat16))
    bh_p = jnp.zeros((1, l_p), jnp.float32).at[:, :num_labels].set(bh[None, :])

    # VMEM budget from the actual block sizes (x2 for double-buffering).
    blocks = [
        ((tq, k), jnp.bfloat16),         # streamed x chunk
        ((k, c_hid_p), jnp.bfloat16),    # wc (resident)
        ((1, c_hid_p), jnp.float32),     # bc (resident)
        ((1, c_hid_p), jnp.float32),     # pooled output block
    ]
    est = sum(2 * _tile_padded_bytes(s, d) for s, d in blocks)
    est += 4 * tq * c_hid_p * 4          # acc / hact in-kernel temporaries
    try:
        vmem_cap = int(pltpu.get_tpu_info().vmem_capacity_bytes)
    except Exception:
        vmem_cap = 64 * 2 ** 20
    vmem_limit = int(min(max(2 * est, 8 * 2 ** 20), vmem_cap // 2))

    conv_flops = 2 * b * hw_p * k * c_hid_p
    conv_bytes = (b * hw_p * k * 2 + k * c_hid_p * 2 + c_hid_p * 4 + b * c_hid_p * 4)

    kern = functools.partial(conv_pool_kernel, hw=hw, tq=tq,
                             inv_hw=float(1.0 / hw), needs_mask=needs_mask)

    pooled = pl.pallas_call(
        kern,
        out_shape=jax.ShapeDtypeStruct((b, 1, c_hid_p), jnp.float32),
        grid_spec=pltpu.PrefetchScalarGridSpec(
            num_scalar_prefetch=0,
            grid=(b, n_chunks),
            in_specs=[
                pl.BlockSpec((None, tq, k), lambda bi, ci: (bi, ci, 0)),   # streamed
                pl.BlockSpec((k, c_hid_p), lambda bi, ci: (0, 0)),         # resident
                pl.BlockSpec((1, c_hid_p), lambda bi, ci: (0, 0)),         # resident
            ],
            out_specs=pl.BlockSpec((None, 1, c_hid_p), lambda bi, ci: (bi, 0, 0)),
        ),
        compiler_params=pltpu.CompilerParams(
            dimension_semantics=("parallel", "arbitrary"),   # batch -> megacore
            vmem_limit_bytes=vmem_limit),
        cost_estimate=pl.CostEstimate(flops=conv_flops, transcendentals=0,
                                      bytes_accessed=conv_bytes),
    )(patches, wc_p, bc_p)

    # Batched classifier head: one dense MXU call for the whole batch.
    pooled_b = pooled.reshape(b, c_hid_p).astype(jnp.bfloat16)
    head_flops = 2 * b * c_hid_p * l_p
    head_bytes = b * c_hid_p * 2 + c_hid_p * l_p * 2 + l_p * 4 + b * l_p * 4

    logits_p = pl.pallas_call(
        head_kernel,
        out_shape=jax.ShapeDtypeStruct((b, l_p), jnp.float32),
        grid_spec=pltpu.PrefetchScalarGridSpec(
            num_scalar_prefetch=0,
            grid=(1,),
            in_specs=[pl.BlockSpec((b, c_hid_p), lambda i: (0, 0)),
                      pl.BlockSpec((c_hid_p, l_p), lambda i: (0, 0)),
                      pl.BlockSpec((1, l_p), lambda i: (0, 0))],
            out_specs=pl.BlockSpec((b, l_p), lambda i: (0, 0)),
        ),
        compiler_params=pltpu.CompilerParams(
            dimension_semantics=("arbitrary",)),
        cost_estimate=pl.CostEstimate(flops=head_flops, transcendentals=0,
                                      bytes_accessed=head_bytes),
    )(pooled_b, wh_p, bh_p)

    return logits_p[:, :num_labels]


def init_params(key, c_in, c_hid, num_labels):
    k1, k2, k3, k4 = jax.random.split(key, 4)
    # Conv weight in HWIO flattened to [9*C_in, C_hid] (row order = (kh, kw, c_in)).
    wc = jax.random.normal(k1, (9 * c_in, c_hid), jnp.float32) * 0.05
    bc = jax.random.normal(k2, (c_hid,), jnp.float32) * 0.01
    wh = jax.random.normal(k3, (c_hid, num_labels), jnp.float32) * 0.05
    bh = jax.random.normal(k4, (num_labels,), jnp.float32) * 0.01
    return wc, bc, wh, bh


def reference_forward(image_nchw, params):
    """Pure-JAX reference with the same bf16 weight/activation quantization."""
    wc, bc, wh, bh = params
    x = jnp.transpose(image_nchw, (0, 2, 3, 1)).astype(jnp.float32)
    c_in = x.shape[-1]
    xq = x.astype(jnp.bfloat16).astype(jnp.float32)
    wcq = wc.astype(jnp.bfloat16).astype(jnp.float32).reshape(3, 3, c_in, -1)
    whq = wh.astype(jnp.bfloat16).astype(jnp.float32)
    conv = lax.conv_general_dilated(
        xq, wcq, window_strides=(1, 1), padding="SAME",
        dimension_numbers=("NHWC", "HWIO", "NHWC"),
        precision=lax.Precision.HIGHEST)
    act = jnp.maximum(conv + bc, 0.0)
    pooled = jnp.mean(act, axis=(1, 2))
    return jnp.dot(pooled, whq, precision=lax.Precision.HIGHEST) + bh


if __name__ == "__main__":
    key = jax.random.PRNGKey(0)
    k_img, k_par = jax.random.split(key)

    B, C_IN, H, W = 2, 4, 16, 16
    C_HID, NUM_LABELS = 32, 10

    image = jax.random.normal(k_img, (B, C_IN, H, W), jnp.float32)   # batch['image'] (NCHW)
    params = init_params(k_par, C_IN, C_HID, NUM_LABELS)

    logits = image_model_forward(image, params)
    jax.block_until_ready(logits)

    ref = reference_forward(image, params)
    assert logits.shape == (B, NUM_LABELS)
    # bf16 MXU inputs with f32 accumulation -> slightly loosened tolerance.
    assert jnp.allclose(logits, ref, atol=2e-3, rtol=2e-2), \
        float(jnp.max(jnp.abs(logits - ref)))

    print("KERNEL_OK")
</pallas_src>

<mosaic_0001>
module attributes {stable_mosaic.version = 11 : i64} {
  func.func @conv_pool_kernel(%arg0: i32, %arg1: i32, %arg2: memref<1x256x36xbf16, #tpu.memory_space<vmem>>, %arg3: memref<36x128xbf16, #tpu.memory_space<vmem>>, %arg4: memref<1x128xf32, #tpu.memory_space<vmem>>, %arg5: memref<1x1x128xf32, #tpu.memory_space<vmem>>) attributes {dimension_semantics = [#tpu.dimension_semantics<parallel>, #tpu.dimension_semantics<arbitrary>], iteration_bounds = array<i64: 2, 1>, scalar_prefetch = 0 : i64, scratch_operands = 0 : i64, tpu.core_type = #tpu.core_type<tc>, window_params = [{transform_indices = @transform_0, window_bounds = array<i64: 1, 256, 36>}, {pipeline_mode = #tpu.pipeline_mode<synchronous>, transform_indices = @transform_1, window_bounds = array<i64: 36, 128>}, {pipeline_mode = #tpu.pipeline_mode<synchronous>, transform_indices = @transform_2, window_bounds = array<i64: 1, 128>}, {transform_indices = @transform_3, window_bounds = array<i64: 1, 1, 128>}]} {
    %c0_i32 = arith.constant 0 : i32
    %0 = arith.cmpi eq, %arg1, %c0_i32 : i32
    %1 = arith.extui %0 : i1 to i32
    %c0_i32_0 = arith.constant 0 : i32
    %2 = arith.cmpi ne, %1, %c0_i32_0 : i32
    scf.if %2 {
      %cst_17 = arith.constant 0.000000e+00 : f32
      %23 = vector.broadcast %cst_17 : f32 to vector<1x128xf32>
      %c0_18 = arith.constant 0 : index
      %c0_19 = arith.constant 0 : index
      %c0_20 = arith.constant 0 : index
      %24 = vector.load %arg5[%c0_18, %c0_19, %c0_20] : memref<1x1x128xf32, #tpu.memory_space<vmem>>, vector<1x1x128xf32>
      %25 = vector.shape_cast %24 : vector<1x1x128xf32> to vector<1x128xf32>
      %26 = vector.shape_cast %23 : vector<1x128xf32> to vector<1x1x128xf32>
      tpu.vector_store %arg5[%c0_18, %c0_19, %c0_20], %26 {strides = array<i32>} : memref<1x1x128xf32, #tpu.memory_space<vmem>>, vector<1x1x128xf32>,
    } else {
    }
    %c0 = arith.constant 0 : index
    %c0_1 = arith.constant 0 : index
    %c0_2 = arith.constant 0 : index
    %3 = vector.load %arg2[%c0, %c0_1, %c0_2] : memref<1x256x36xbf16, #tpu.memory_space<vmem>>, vector<1x256x36xbf16>
    %4 = vector.shape_cast %3 : vector<1x256x36xbf16> to vector<256x36xbf16>
    %c0_3 = arith.constant 0 : index
    %c0_4 = arith.constant 0 : index
    %5 = vector.load %arg3[%c0_3, %c0_4] : memref<36x128xbf16, #tpu.memory_space<vmem>>, vector<36x128xbf16>
    %cst = arith.constant dense<0.000000e+00> : vector<256x128xf32>
    %6 = tpu.matmul %4, %5, %cst {dimension_numbers = #tpu.dot_dimension_numbers<[1], [0], [0], [1], [0, 0, 1, 1], [], []>} : vector<256x36xbf16>, vector<36x128xbf16>, vector<256x128xf32> -> vector<256x128xf32>
    %c0_5 = arith.constant 0 : index
    %c0_6 = arith.constant 0 : index
    %7 = vector.load %arg4[%c0_5, %c0_6] : memref<1x128xf32, #tpu.memory_space<vmem>>, vector<1x128xf32>
    %8 = vector.broadcast %7 : vector<1x128xf32> to vector<256x128xf32>
    %9 = arith.addf %6, %8 : vector<256x128xf32>
    %cst_7 = arith.constant 0.000000e+00 : f32
    %10 = vector.broadcast %cst_7 : f32 to vector<256x128xf32>
    %11 = arith.maximumf %9, %10 : vector<256x128xf32>
    %c0_8 = arith.constant 0 : index
    %c0_9 = arith.constant 0 : index
    %c0_10 = arith.constant 0 : index
    %12 = vector.load %arg5[%c0_8, %c0_9, %c0_10] : memref<1x1x128xf32, #tpu.memory_space<vmem>>, vector<1x1x128xf32>
    %13 = vector.shape_cast %12 : vector<1x1x128xf32> to vector<1x128xf32>
    %cst_11 = arith.constant dense<0.000000e+00> : vector<128xf32>
    %14 = vector.multi_reduction <add>, %11, %cst_11 [0] : vector<256x128xf32> to vector<128xf32>
    %15 = vector.shape_cast %14 : vector<128xf32> to vector<1x128xf32>
    %16 = arith.addf %13, %15 : vector<1x128xf32>
    %c0_12 = arith.constant 0 : index
    %c0_13 = arith.constant 0 : index
    %c0_14 = arith.constant 0 : index
    %17 = vector.load %arg5[%c0_12, %c0_13, %c0_14] : memref<1x1x128xf32, #tpu.memory_space<vmem>>, vector<1x1x128xf32>
    %18 = vector.shape_cast %17 : vector<1x1x128xf32> to vector<1x128xf32>
    %19 = vector.shape_cast %16 : vector<1x128xf32> to vector<1x1x128xf32>
    tpu.vector_store %arg5[%c0_12, %c0_13, %c0_14], %19 {strides = array<i32>} : memref<1x1x128xf32, #tpu.memory_space<vmem>>, vector<1x1x128xf32>,
    %c0_i32_15 = arith.constant 0 : i32
    %20 = arith.cmpi eq, %arg1, %c0_i32_15 : i32
    %21 = arith.extui %20 : i1 to i32
    %c0_i32_16 = arith.constant 0 : i32
    %22 = arith.cmpi ne, %21, %c0_i32_16 : i32
    scf.if %22 {
      %c0_17 = arith.constant 0 : index
      %c0_18 = arith.constant 0 : index
      %c0_19 = arith.constant 0 : index
      %23 = vector.load %arg5[%c0_17, %c0_18, %c0_19] : memref<1x1x128xf32, #tpu.memory_space<vmem>>, vector<1x1x128xf32>
      %24 = vector.shape_cast %23 : vector<1x1x128xf32> to vector<1x128xf32>
      %cst_20 = arith.constant 3.906250e-03 : f32
      %25 = vector.broadcast %cst_20 : f32 to vector<1x128xf32>
      %26 = arith.mulf %24, %25 : vector<1x128xf32>
      %c0_21 = arith.constant 0 : index
      %c0_22 = arith.constant 0 : index
      %c0_23 = arith.constant 0 : index
      %27 = vector.load %arg5[%c0_21, %c0_22, %c0_23] : memref<1x1x128xf32, #tpu.memory_space<vmem>>, vector<1x1x128xf32>
      %28 = vector.shape_cast %27 : vector<1x1x128xf32> to vector<1x128xf32>
      %29 = vector.shape_cast %26 : vector<1x128xf32> to vector<1x1x128xf32>
      tpu.vector_store %arg5[%c0_21, %c0_22, %c0_23], %29 {strides = array<i32>} : memref<1x1x128xf32, #tpu.memory_space<vmem>>, vector<1x1x128xf32>,
    } else {
    }
    return
  }
  func.func @transform_0(%arg0: i32, %arg1: i32) -> (i32, i32, i32) {
    %c0_i32 = arith.constant 0 : i32
    %c0_i32_0 = arith.constant 0 : i32
    return %arg0, %arg1, %c0_i32 : i32, i32, i32
  }
  func.func @transform_1(%arg0: i32, %arg1: i32) -> (i32, i32) {
    %c0_i32 = arith.constant 0 : i32
    %c0_i32_0 = arith.constant 0 : i32
    %c0_i32_1 = arith.constant 0 : i32
    return %c0_i32, %c0_i32_0 : i32, i32
  }
  func.func @transform_2(%arg0: i32, %arg1: i32) -> (i32, i32) {
    %c0_i32 = arith.constant 0 : i32
    %c0_i32_0 = arith.constant 0 : i32
    %c0_i32_1 = arith.constant 0 : i32
    return %c0_i32, %c0_i32_0 : i32, i32
  }
  func.func @transform_3(%arg0: i32, %arg1: i32) -> (i32, i32, i32) {
    %c0_i32 = arith.constant 0 : i32
    %c0_i32_0 = arith.constant 0 : i32
    %c0_i32_1 = arith.constant 0 : i32
    return %arg0, %c0_i32, %c0_i32_0 : i32, i32, i32
  }
}

</mosaic_0001>

<llo_original>
// kernel: tpu_custom_call.1
$region0: #{tpu_custom_call.1}
  #allocation0 [shape = 'u32[]', space=smem, size = 0x4, offset = 0x4, fixed_abs, tag = 'smem constant byte address 0x4 - core index']
  #allocation1 [shape = 'u32[72,128]{1,0:T(1,128)}', space=vmem, size = 0x9000, scoped, tag = 'internal scratch']
  %s0 = inlined_call_operand.vmem [shape: bf16[2,256,36], index: 0, kind: input, shape index: {}]
  %s1 = inlined_call_operand.vmem [shape: bf16[36,128], index: 1, kind: input, shape index: {}]
  %s2 = inlined_call_operand.vmem [shape: f32[1,128], index: 2, kind: input, shape index: {}]
  %s3 = inlined_call_operand.hbm [shape: f32[2,1,128], index: 3, kind: output, shape index: {}]
  %s4 = sld [smem:[#allocation0]]
  $region53: #{tpu_custom_call.1} parent=0
    _
  %s6 = ssub.s32 1, %s4
  %s7 = scalar_select 0, %s6, %s4
  $region1: #{tpu_custom_call.1} parent=0
    #allocation2 [shape = 'u8[1024]{0}', space=vmem, size = 0x400, scoped, tag = 'output window, operand 0']
    #allocation3 [shape = 's32[2]{0}', space=sflag, size = 0x8, scoped, tag = 'scoped memory for tpu_custom_call.1']
    %8 = vsyncpa [#allocation3], 0
    %s9 = scalar_lea.sflag [#allocation3], 1
    %10 = vsyncpa %s9, 0
    loop: start=0, step=1, limit=4
    $region2: #{tpu_custom_call.1} parent=1 // loop_pre_header
      _
    $region3: #{tpu_custom_call.1} parent=1 // loop_header
      %s12 = sphi 0, %s16
      %p13 = scmp.ge.s32.totalorder %s12, 4
      %s19 = sphi 0, %s31
      %s20 = sphi 0, %s27
      %s21 = sphi 0, %s19
      %s22 = sphi 0, %s20
      %s23 = sphi 0, %s21
      %s24 = sphi 0, %s22
      %s36 = sphi 0, %s38
      %s39 = sphi 0, %s36
      %s40 = sphi 0, %s39
      %s56 = sphi 0, %s40
      %s60 = sphi 0, %s60
      %s62 = sphi 0, %s60
      %s63 = sphi 0, %s62
      %s77 = sphi 0, %s63
      %s81 = sphi 0, %s81
      %s83 = sphi 0, %s81
      %s84 = sphi 0, %s83
      %s98 = sphi 0, %s84
      %s104 = sphi 0, %s106
      %s107 = sphi 0, %s104
      %s108 = sphi 0, %s107
      %s124 = sphi 0, %s108
    $region4: #{tpu_custom_call.1} parent=1 // loop_header_branch
      %15 = sbr.rel (%p13) target = $region8
    $region5: #{tpu_custom_call.1} parent=1 // loop_body
      %s17 = ssub.s32 %s12, 1
      %s18 = ssub.s32 %s12, 2
      %s25 = sadd.s32 1, %s20
      %p26 = scmp.ge.s32.totalorder %s25, 1
      %s27 = scalar_select %p26, 0, %s25
      %s28 = sadd.s32 1, %s19
      %s29 = scalar_select %p26, %s28, %s19
      %p30 = scmp.ge.s32.totalorder %s29, 2
      %s31 = scalar_select %p30, 0, %s29
      %s32 = ssub.s32 %s19, %s31
      %s33 = ssub.s32 %s20, %s27
      %s34 = sor.u32 %s32, %s33
      %p35 = scmp.eq.s32.totalorder %s34, 0
      %s37 = sadd.s32 %s36, 1
      %s38 = scalar_select %p35, %s36, %s37
      %p41 = pneg %p35
      %p42 = scmp.eq.s32.totalorder %s12, 1
      %p43 = por %p41, %p42
      %p44 = scmp.ne.s32.totalorder %s36, %s39
      %p45 = scmp.eq.s32.totalorder %s12, 0
      %p46 = por %p44, %p45
      %p47 = scmp.ne.s32.totalorder %s36, %s39
      %p48 = scmp.eq.s32.totalorder %s17, 1
      %p49 = por %p47, %p48
      %p50 = scmp.ne.s32.totalorder %s39, %s40
      %p51 = scmp.eq.s32.totalorder %s17, 0
      %p52 = por %p50, %p51
      %p53 = scmp.ne.s32.totalorder %s39, %s40
      %p54 = scmp.eq.s32.totalorder %s18, 1
      %p55 = por %p53, %p54
      %p57 = scmp.ne.s32.totalorder %s40, %s56
      %p58 = scmp.eq.s32.totalorder %s18, 0
      %p59 = por %p57, %p58
      %s61 = sadd.s32 %s60, 1
      %p64 = scmp.eq.s32.totalorder %s12, 1
      %p65 = scmp.ne.s32.totalorder %s60, %s62
      %p66 = scmp.eq.s32.totalorder %s12, 0
      %p67 = por %p65, %p66
      %p68 = scmp.ne.s32.totalorder %s60, %s62
      %p69 = scmp.eq.s32.totalorder %s17, 1
      %p70 = por %p68, %p69
      %p71 = scmp.ne.s32.totalorder %s62, %s63
      %p72 = scmp.eq.s32.totalorder %s17, 0
      %p73 = por %p71, %p72
      %p74 = scmp.ne.s32.totalorder %s62, %s63
      %p75 = scmp.eq.s32.totalorder %s18, 1
      %p76 = por %p74, %p75
      %p78 = scmp.ne.s32.totalorder %s63, %s77
      %p79 = scmp.eq.s32.totalorder %s18, 0
      %p80 = por %p78, %p79
      %s82 = sadd.s32 %s81, 1
      %p85 = scmp.eq.s32.totalorder %s12, 1
      %p86 = scmp.ne.s32.totalorder %s81, %s83
      %p87 = scmp.eq.s32.totalorder %s12, 0
      %p88 = por %p86, %p87
      %p89 = scmp.ne.s32.totalorder %s81, %s83
      %p90 = scmp.eq.s32.totalorder %s17, 1
      %p91 = por %p89, %p90
      %p92 = scmp.ne.s32.totalorder %s83, %s84
      %p93 = scmp.eq.s32.totalorder %s17, 0
      %p94 = por %p92, %p93
      %p95 = scmp.ne.s32.totalorder %s83, %s84
      %p96 = scmp.eq.s32.totalorder %s18, 1
      %p97 = por %p95, %p96
      %p99 = scmp.ne.s32.totalorder %s84, %s98
      %p100 = scmp.eq.s32.totalorder %s18, 0
      %p101 = por %p99, %p100
      %s102 = ssub.s32 %s19, %s31
      %p103 = scmp.eq.s32.totalorder %s102, 0
      %s105 = sadd.s32 %s104, 1
      %s106 = scalar_select %p103, %s104, %s105
      %p109 = pneg %p103
      %p110 = scmp.eq.s32.totalorder %s12, 1
      %p111 = por %p109, %p110
      %p112 = scmp.ne.s32.totalorder %s104, %s107
      %p113 = scmp.eq.s32.totalorder %s12, 0
      %p114 = por %p112, %p113
      %p115 = scmp.ne.s32.totalorder %s104, %s107
      %p116 = scmp.eq.s32.totalorder %s17, 1
      %p117 = por %p115, %p116
      %p118 = scmp.ne.s32.totalorder %s107, %s108
      %p119 = scmp.eq.s32.totalorder %s17, 0
      %p120 = por %p118, %p119
      %p121 = scmp.ne.s32.totalorder %s107, %s108
      %p122 = scmp.eq.s32.totalorder %s18, 1
      %p123 = por %p121, %p122
      %p125 = scmp.ne.s32.totalorder %s108, %s124
      %p126 = scmp.eq.s32.totalorder %s18, 0
      %p127 = por %p125, %p126
      %p128 = scmp.le.s32.totalorder 1, %s12
      %p129 = scmp.lt.s32.totalorder %s12, 3
      %p130 = pnand %p128, %p129
      %p131 = pneg %p130
      // Predicated region
      $region9: #{tpu_custom_call.1} parent=5 // pred_check
        _
      $region10: #{tpu_custom_call.1} parent=5 // pred_check_branch
        %133 = sbr.rel (%p130) target = $region12
      $region11: #{tpu_custom_call.1} parent=5 // pred_region
        %s134 = ssub.s32 %s12, 1
        // Predicated region
        $region13: #{tpu_custom_call.1} parent=11 // pred_check
          %p135 = pneg %p73
        $region14: #{tpu_custom_call.1} parent=11 // pred_check_branch
          %137 = sbr.rel (%p135) target = $region16
        $region15: #{tpu_custom_call.1} parent=11 // pred_region
          _
        $region16: #{tpu_custom_call.1} parent=11 // pred_fallthru
          _
        // Predicated region
        $region17: #{tpu_custom_call.1} parent=11 // pred_check
          %p138 = pneg %p94
        $region18: #{tpu_custom_call.1} parent=11 // pred_check_branch
          %140 = sbr.rel (%p138) target = $region20
        $region19: #{tpu_custom_call.1} parent=11 // pred_region
          _
        $region20: #{tpu_custom_call.1} parent=11 // pred_fallthru
          _
      $region12: #{tpu_custom_call.1} parent=5 // pred_fallthru
        _
      %p141 = scmp.lt.s32.totalorder %s12, 2
      // Predicated region
      $region21: #{tpu_custom_call.1} parent=5 // pred_check
        %p142 = pneg %p141
      $region22: #{tpu_custom_call.1} parent=5 // pred_check_branch
        %144 = sbr.rel (%p142) target = $region24
      $region23: #{tpu_custom_call.1} parent=5 // pred_region
        // Predicated region
        $region25: #{tpu_custom_call.1} parent=23 // pred_check
          %p145 = pneg %p46
        $region26: #{tpu_custom_call.1} parent=23 // pred_check_branch
          %147 = sbr.rel (%p145) target = $region28
        $region27: #{tpu_custom_call.1} parent=23 // pred_region
          %s148 = smul.u32 32, %s20
          %p149 = scmp.lt.s32.totalorder %s19, 1
          %s150 = scalar_select %p149, %s19, 1
          %p151 = scmp.lt.s32.totalorder %s148, 31
          %s152 = scalar_select %p151, %s148, 31
          %s153 = smul.addr %s150, 32
          %s154 = sadd.s32 %s152, %s153
          %s155 = smul.addr %s154, 4
          %s156 = scalar_lea.vmem %s0, %s155
          %s157 = smul.u32 32, %s20
        $region28: #{tpu_custom_call.1} parent=23 // pred_fallthru
          _
      $region24: #{tpu_custom_call.1} parent=5 // pred_fallthru
        _
      %p158 = scmp.le.s32.totalorder 1, %s12
      %p159 = scmp.lt.s32.totalorder %s12, 3
      %p160 = pnand %p158, %p159
      %p161 = pneg %p160
      // Predicated region
      $region29: #{tpu_custom_call.1} parent=5 // pred_check
        _
      $region30: #{tpu_custom_call.1} parent=5 // pred_check_branch
        %163 = sbr.rel (%p160) target = $region32
      $region31: #{tpu_custom_call.1} parent=5 // pred_region
        %s164 = ssub.s32 %s12, 1
        %s165 = smul.u32 32, %s22
        %p166 = scmp.lt.s32.totalorder %s21, 1
        %s167 = scalar_select %p166, %s21, 1
        %p168 = scmp.lt.s32.totalorder %s165, 31
        %s169 = scalar_select %p168, %s165, 31
        %s170 = smul.addr %s167, 32
        %s171 = sadd.s32 %s169, %s170
        %s172 = smul.addr %s171, 4
        %s173 = scalar_lea.vmem %s0, %s172
        %p174 = pneg %p52
        %p175 = pneg %p49
        %p176 = pneg %p73
        %p177 = pneg %p70
        %p178 = pneg %p94
        %p179 = pneg %p91
        %p180 = pneg %p120
        %p181 = pneg %p117
        %s182 = sand.u32 %s107, 1
        %s183 = scalar_lea.sflag [#allocation3], %s182
        %s184 = sand.u32 %s107, 1
        %s185 = scalar_lea.vmem [#allocation2], %s184
        %s186 = smul.u32 32, %s22
        %p187 = scmp.lt.s32.totalorder %s21, 1
        %s188 = scalar_select %p187, %s21, 1
        %p189 = scmp.lt.s32.totalorder %s186, 31
        %s190 = scalar_select %p189, %s186, 31
        %s191 = smul.addr %s188, 32
        %s192 = sadd.s32 %s190, %s191
        %s193 = smul.addr %s192, 4
        %s194 = scalar_lea.vmem %s0, %s193
        %s195 = smul.u32 32, %s22
        %p197 = scmp.eq.s32.totalorder %s22, 0
        // Predicated region
        $region33: #{tpu_custom_call.1} parent=31 // pred_check
          %p198 = pneg %p197
        $region34: #{tpu_custom_call.1} parent=31 // pred_check_branch
          %200 = sbr.rel (%p198) target = $region36
        $region35: #{tpu_custom_call.1} parent=31 // pred_region
          %201 = vst [vmem:[%s185] sm:$0x1] 0.0
        $region36: #{tpu_custom_call.1} parent=31 // pred_fallthru
          _
        %v202 = vld [vmem:[%s194] sm:$0xf]
        %v203 = vld [vmem:[%s194 + $0x4] sm:$0xf]
        %v204 = vld [vmem:[%s194 + $0x8] sm:$0xf]
        %v205 = vld [vmem:[%s194 + $0xc] sm:$0xf]
        %v206 = vld [vmem:[%s194 + $0x10] sm:$0xf]
        %v207 = vld [vmem:[%s194 + $0x14] sm:$0xf]
        %v208 = vld [vmem:[%s194 + $0x18] sm:$0xf]
        %v209 = vld [vmem:[%s194 + $0x1c] sm:$0xf]
        %v210 = vld [vmem:[%s194 + $0x20] sm:$0xf]
        %v211 = vld [vmem:[%s194 + $0x24] sm:$0xf]
        %v212 = vld [vmem:[%s194 + $0x28] sm:$0xf]
        %v213 = vld [vmem:[%s194 + $0x2c] sm:$0xf]
        %v214 = vld [vmem:[%s194 + $0x30] sm:$0xf]
        %v215 = vld [vmem:[%s194 + $0x34] sm:$0xf]
        %v216 = vld [vmem:[%s194 + $0x38] sm:$0xf]
        %v217 = vld [vmem:[%s194 + $0x3c] sm:$0xf]
        %v218 = vld [vmem:[%s194 + $0x40] sm:$0xf]
        %v219 = vld [vmem:[%s194 + $0x44] sm:$0xf]
        %v220 = vld [vmem:[%s194 + $0x48] sm:$0xf]
        %v221 = vld [vmem:[%s194 + $0x4c] sm:$0xf]
        %v222 = vld [vmem:[%s194 + $0x50] sm:$0xf]
        %v223 = vld [vmem:[%s194 + $0x54] sm:$0xf]
        %v224 = vld [vmem:[%s194 + $0x58] sm:$0xf]
        %v225 = vld [vmem:[%s194 + $0x5c] sm:$0xf]
        %v226 = vld [vmem:[%s194 + $0x60] sm:$0xf]
        %v227 = vld [vmem:[%s194 + $0x64] sm:$0xf]
        %v228 = vld [vmem:[%s194 + $0x68] sm:$0xf]
        %v229 = vld [vmem:[%s194 + $0x6c] sm:$0xf]
        %v230 = vld [vmem:[%s194 + $0x70] sm:$0xf]
        %v231 = vld [vmem:[%s194 + $0x74] sm:$0xf]
        %v232 = vld [vmem:[%s194 + $0x78] sm:$0xf]
        %v233 = vld [vmem:[%s194 + $0x7c] sm:$0xf]
        %v234 = vld [vmem:[%s1] sm:$0xf]
        %v235 = vld [vmem:[%s1 + $0x4] sm:$0xf]
        %v236 = vld [vmem:[%s1 + $0x8] sm:$0xf]
        %v237 = vld [vmem:[%s1 + $0xc] sm:$0xf]
        %v238 = vld [vmem:[%s1 + $0x10] sm:$0x3]
        %v239 = vld [vmem:[%s2] sm:$0x1]
        %v241 = vperm.slane %v239, 0
        %v275 = vunpack.c.l.b16 %v202
        %v276 = vunpack.c.l.b16 %v203
        %v277 = vunpack.c.l.b16 %v204
        %v278 = vunpack.c.l.b16 %v205
        %v279 = vunpack.c.l.b16 %v206
        %v280 = vunpack.c.l.b16 %v207
        %v281 = vunpack.c.l.b16 %v208
        %v282 = vunpack.c.l.b16 %v209
        %v283 = vunpack.c.l.b16 %v210
        %v284 = vunpack.c.l.b16 %v211
        %v285 = vunpack.c.l.b16 %v212
        %v286 = vunpack.c.l.b16 %v213
        %v287 = vunpack.c.l.b16 %v214
        %v288 = vunpack.c.l.b16 %v215
        %v289 = vunpack.c.l.b16 %v216
        %v290 = vunpack.c.l.b16 %v217
        %v291 = vunpack.c.l.b16 %v218
        %v292 = vunpack.c.l.b16 %v219
        %v293 = vunpack.c.l.b16 %v220
        %v294 = vunpack.c.l.b16 %v221
        %v295 = vunpack.c.l.b16 %v222
        %v296 = vunpack.c.l.b16 %v223
        %v297 = vunpack.c.l.b16 %v224
        %v298 = vunpack.c.l.b16 %v225
        %v299 = vunpack.c.l.b16 %v226
        %v300 = vunpack.c.l.b16 %v227
        %v301 = vunpack.c.l.b16 %v228
        %v302 = vunpack.c.l.b16 %v229
        %v303 = vunpack.c.l.b16 %v230
        %v304 = vunpack.c.l.b16 %v231
        %v305 = vunpack.c.l.b16 %v232
        %v306 = vunpack.c.l.b16 %v233
        %v307 = vpack.c.b16 %v276, %v275
        %v308 = vpack.c.b16 %v278, %v277
        %v309 = vpack.c.b16 %v280, %v279
        %v310 = vpack.c.b16 %v282, %v281
        %v311 = vpack.c.b16 %v284, %v283
        %v312 = vpack.c.b16 %v286, %v285
        %v313 = vpack.c.b16 %v288, %v287
        %v314 = vpack.c.b16 %v290, %v289
        %v315 = vpack.c.b16 %v292, %v291
        %v316 = vpack.c.b16 %v294, %v293
        %v317 = vpack.c.b16 %v296, %v295
        %v318 = vpack.c.b16 %v298, %v297
        %v319 = vpack.c.b16 %v300, %v299
        %v320 = vpack.c.b16 %v302, %v301
        %v321 = vpack.c.b16 %v304, %v303
        %v322 = vpack.c.b16 %v306, %v305
        %v328 = vunpack.c.l.b16 %v234
        %v329 = vunpack.c.l.b16 %v235
        %v330 = vunpack.c.l.b16 %v236
        %v331 = vunpack.c.l.b16 %v237
        %v332 = vunpack.c.l.b16 %v238
        %v333 = vpack.c.b16 %v329, %v328
        %v334 = vpack.c.b16 %v331, %v330
        %v335 = vpack.c.b16 %v332, %v332
        %vm338 = vcmask 293888
        %v340 = vsel %vm338, %v307, 0
        %v343 = vsel %vm338, %v308, 0
        %v346 = vsel %vm338, %v309, 0
        %v349 = vsel %vm338, %v310, 0
        %v352 = vsel %vm338, %v311, 0
        %v355 = vsel %vm338, %v312, 0
        %v358 = vsel %vm338, %v313, 0
        %v361 = vsel %vm338, %v314, 0
        %v364 = vsel %vm338, %v315, 0
        %v367 = vsel %vm338, %v316, 0
        %v370 = vsel %vm338, %v317, 0
        %v373 = vsel %vm338, %v318, 0
        %v376 = vsel %vm338, %v319, 0
        %v379 = vsel %vm338, %v320, 0
        %v382 = vsel %vm338, %v321, 0
        %v385 = vsel %vm338, %v322, 0
        %vm387 = vcmask 1041408
        %v389 = vsel %vm387, %v335, 0
        %391 = vmatpush.bf16.msra.mxu0 0
        %392 = vmatpush.bf16.msra.mxu0 0
        %393 = vmatpush.bf16.msra.mxu0 0
        %394 = vmatpush.bf16.msra.mxu0 0
        %395 = vmatpush.bf16.msra.mxu0 0
        %396 = vmatpush.bf16.msra.mxu0 %v389
        %397 = vmatpush.bf16.msra.mxu0 %v334
        %398 = vmatpush.bf16.msra.mxu0 %v333
        %399 = vmatmul.bf16.gmra.mxu0 %v340
        %v400 = vpop.f32.mrf.mxu0
        %v401 = vadd.f32 %v241, %v400
        %v402 = vpop.f32.mrf.mxu0
        %v403 = vadd.f32 %v241, %v402
        %404 = vmatmul.bf16.gmra.mxu0 %v343
        %v405 = vpop.f32.mrf.mxu0
        %v406 = vadd.f32 %v241, %v405
        %v407 = vpop.f32.mrf.mxu0
        %v408 = vadd.f32 %v241, %v407
        %409 = vmatmul.bf16.gmra.mxu0 %v346
        %v410 = vpop.f32.mrf.mxu0
        %v411 = vadd.f32 %v241, %v410
        %v412 = vpop.f32.mrf.mxu0
        %v413 = vadd.f32 %v241, %v412
        %414 = vmatmul.bf16.gmra.mxu0 %v349
        %v415 = vpop.f32.mrf.mxu0
        %v416 = vadd.f32 %v241, %v415
        %v417 = vpop.f32.mrf.mxu0
        %v418 = vadd.f32 %v241, %v417
        %419 = vmatmul.bf16.gmra.mxu0 %v352
        %v420 = vpop.f32.mrf.mxu0
        %v421 = vadd.f32 %v241, %v420
        %v422 = vpop.f32.mrf.mxu0
        %v423 = vadd.f32 %v241, %v422
        %424 = vmatmul.bf16.gmra.mxu0 %v355
        %v425 = vpop.f32.mrf.mxu0
        %v426 = vadd.f32 %v241, %v425
        %v427 = vpop.f32.mrf.mxu0
        %v428 = vadd.f32 %v241, %v427
        %429 = vmatmul.bf16.gmra.mxu0 %v358
        %v430 = vpop.f32.mrf.mxu0
        %v431 = vadd.f32 %v241, %v430
        %v432 = vpop.f32.mrf.mxu0
        %v433 = vadd.f32 %v241, %v432
        %434 = vmatmul.bf16.gmra.mxu0 %v361
        %v435 = vpop.f32.mrf.mxu0
        %v436 = vadd.f32 %v241, %v435
        %v437 = vpop.f32.mrf.mxu0
        %v438 = vadd.f32 %v241, %v437
        %439 = vmatmul.bf16.gmra.mxu0 %v364
        %v440 = vpop.f32.mrf.mxu0
        %v441 = vadd.f32 %v241, %v440
        %v442 = vpop.f32.mrf.mxu0
        %v443 = vadd.f32 %v241, %v442
        %444 = vmatmul.bf16.gmra.mxu0 %v367
        %v445 = vpop.f32.mrf.mxu0
        %v446 = vadd.f32 %v241, %v445
        %v447 = vpop.f32.mrf.mxu0
        %v448 = vadd.f32 %v241, %v447
        %449 = vmatmul.bf16.gmra.mxu0 %v370
        %v450 = vpop.f32.mrf.mxu0
        %v451 = vadd.f32 %v241, %v450
        %v452 = vpop.f32.mrf.mxu0
        %v453 = vadd.f32 %v241, %v452
        %454 = vmatmul.bf16.gmra.mxu0 %v373
        %v455 = vpop.f32.mrf.mxu0
        %v456 = vadd.f32 %v241, %v455
        %v457 = vpop.f32.mrf.mxu0
        %v458 = vadd.f32 %v241, %v457
        %459 = vmatmul.bf16.gmra.mxu0 %v376
        %v460 = vpop.f32.mrf.mxu0
        %v461 = vadd.f32 %v241, %v460
        %v462 = vpop.f32.mrf.mxu0
        %v463 = vadd.f32 %v241, %v462
        %464 = vmatmul.bf16.gmra.mxu0 %v379
        %v465 = vpop.f32.mrf.mxu0
        %v466 = vadd.f32 %v241, %v465
        %v467 = vpop.f32.mrf.mxu0
        %v468 = vadd.f32 %v241, %v467
        %469 = vmatmul.bf16.gmra.mxu0 %v382
        %v470 = vpop.f32.mrf.mxu0
        %v471 = vadd.f32 %v241, %v470
        %v472 = vpop.f32.mrf.mxu0
        %v473 = vadd.f32 %v241, %v472
        %474 = vmatmul.bf16.gmra.mxu0 %v385
        %v475 = vpop.f32.mrf.mxu0
        %v476 = vadd.f32 %v241, %v475
        %v477 = vpop.f32.mrf.mxu0
        %v478 = vadd.f32 %v241, %v477
        %479 = vdwg.mxu0
        %v480 = vmax.f32 %v401, 0.0
        %v481 = vmax.f32 %v403, 0.0
        %v482 = vmax.f32 %v406, 0.0
        %v483 = vmax.f32 %v408, 0.0
        %v484 = vmax.f32 %v411, 0.0
        %v485 = vmax.f32 %v413, 0.0
        %v486 = vmax.f32 %v416, 0.0
        %v487 = vmax.f32 %v418, 0.0
        %v488 = vmax.f32 %v421, 0.0
        %v489 = vmax.f32 %v423, 0.0
        %v490 = vmax.f32 %v426, 0.0
        %v491 = vmax.f32 %v428, 0.0
        %v492 = vmax.f32 %v431, 0.0
        %v493 = vmax.f32 %v433, 0.0
        %v494 = vmax.f32 %v436, 0.0
        %v495 = vmax.f32 %v438, 0.0
        %v496 = vmax.f32 %v441, 0.0
        %v497 = vmax.f32 %v443, 0.0
        %v498 = vmax.f32 %v446, 0.0
        %v499 = vmax.f32 %v448, 0.0
        %v500 = vmax.f32 %v451, 0.0
        %v501 = vmax.f32 %v453, 0.0
        %v502 = vmax.f32 %v456, 0.0
        %v503 = vmax.f32 %v458, 0.0
        %v504 = vmax.f32 %v461, 0.0
        %v505 = vmax.f32 %v463, 0.0
        %v506 = vmax.f32 %v466, 0.0
        %v507 = vmax.f32 %v468, 0.0
        %v508 = vmax.f32 %v471, 0.0
        %v509 = vmax.f32 %v473, 0.0
        %v510 = vmax.f32 %v476, 0.0
        %v511 = vmax.f32 %v478, 0.0
        %v512 = vld [vmem:[%s185] sm:$0x1]
        %v513 = vadd.f32 %v480, %v481
        %v514 = vadd.f32 %v513, %v482
        %v515 = vadd.f32 %v514, %v483
        %v516 = vadd.f32 %v515, %v484
        %v517 = vadd.f32 %v516, %v485
        %v518 = vadd.f32 %v517, %v486
        %v519 = vadd.f32 %v518, %v487
        %v520 = vadd.f32 %v519, %v488
        %v521 = vadd.f32 %v520, %v489
        %v522 = vadd.f32 %v521, %v490
        %v523 = vadd.f32 %v522, %v491
        %v524 = vadd.f32 %v523, %v492
        %v525 = vadd.f32 %v524, %v493
        %v526 = vadd.f32 %v525, %v494
        %v527 = vadd.f32 %v526, %v495
        %v528 = vadd.f32 %v527, %v496
        %v529 = vadd.f32 %v528, %v497
        %v530 = vadd.f32 %v529, %v498
        %v531 = vadd.f32 %v530, %v499
        %v532 = vadd.f32 %v531, %v500
        %v533 = vadd.f32 %v532, %v501
        %v534 = vadd.f32 %v533, %v502
        %v535 = vadd.f32 %v534, %v503
        %v536 = vadd.f32 %v535, %v504
        %v537 = vadd.f32 %v536, %v505
        %v538 = vadd.f32 %v537, %v506
        %v539 = vadd.f32 %v538, %v507
        %v540 = vadd.f32 %v539, %v508
        %v541 = vadd.f32 %v540, %v509
        %v542 = vadd.f32 %v541, %v510
        %v543 = vadd.f32 %v542, %v511
        %v544 = vrot.slane %v543, 4
        %v545 = vadd.f32 %v543, %v544
        %v546 = vrot.slane %v545, 2
        %v547 = vadd.f32 %v545, %v546
        %v548 = vrot.slane %v547, 1
        %v549 = vadd.f32 %v547, %v548
        %v550 = vadd.f32 %v512, %v549
        %551 = vst [vmem:[%s185] sm:$0x1] %v550
        // Predicated region
        $region37: #{tpu_custom_call.1} parent=31 // pred_check
          %p552 = pneg %p197
        $region38: #{tpu_custom_call.1} parent=31 // pred_check_branch
          %554 = sbr.rel (%p552) target = $region40
        $region39: #{tpu_custom_call.1} parent=31 // pred_region
          %v555 = vld [vmem:[%s185] sm:$0x1]
          %v556 = vmul.f32 %v555, 0.00390625
          %557 = vst [vmem:[%s185] sm:$0x1] %v556
        $region40: #{tpu_custom_call.1} parent=31 // pred_fallthru
          _
        %s558 = sand.u32 %s107, 1
        %s559 = scalar_lea.sflag [#allocation3], %s558
        %s560 = sand.u32 %s107, 1
        %s561 = scalar_lea.vmem [#allocation2], %s560
        // Predicated region
        $region41: #{tpu_custom_call.1} parent=31 // pred_check
          %p562 = pneg %p117
        $region42: #{tpu_custom_call.1} parent=31 // pred_check_branch
          %564 = sbr.rel (%p562) target = $region44
        $region43: #{tpu_custom_call.1} parent=31 // pred_region
          %566 = vsyncadd %s559, 0
          %s567 = scalar_lea.hbm %s3, %s21
          %s569 = sshll.u32 %s561, 4
          %s570 = int_to_ptr.vmem [resolvable:$true] %s569
          %s571 = sshll.u32 %s567, 4
          %s572 = int_to_ptr.hbm [resolvable:$true] %s571
          %574 = dma.vmem_to_hbm [thread:$0]  %s570, 16, %s572, %s559
        $region44: #{tpu_custom_call.1} parent=31 // pred_fallthru
          _
      $region32: #{tpu_custom_call.1} parent=5 // pred_fallthru
        _
      %p575 = scmp.le.s32.totalorder 2, %s12
      // Predicated region
      $region45: #{tpu_custom_call.1} parent=5 // pred_check
        %p576 = pneg %p575
      $region46: #{tpu_custom_call.1} parent=5 // pred_check_branch
        %578 = sbr.rel (%p576) target = $region48
      $region47: #{tpu_custom_call.1} parent=5 // pred_region
        %s579 = ssub.s32 %s12, 2
        // Predicated region
        $region49: #{tpu_custom_call.1} parent=47 // pred_check
          %p580 = pneg %p123
        $region50: #{tpu_custom_call.1} parent=47 // pred_check_branch
          %582 = sbr.rel (%p580) target = $region52
        $region51: #{tpu_custom_call.1} parent=47 // pred_region
          %s583 = sand.u32 %s108, 1
          %s584 = scalar_lea.sflag [#allocation3], %s583
          %s585 = sand.u32 %s108, 1
          %s586 = scalar_lea.vmem [#allocation2], %s585
          %588 = dma.done %s584, 16
        $region52: #{tpu_custom_call.1} parent=47 // pred_fallthru
          _
      $region48: #{tpu_custom_call.1} parent=5 // pred_fallthru
        _
    $region6: #{tpu_custom_call.1} parent=1 // loop_footer
      %s16 = sadd.s32 1, %s12
    $region7: #{tpu_custom_call.1} parent=1 // loop_footer_branch
      %11 = sbr.rel target = $region3
    $region8: #{tpu_custom_call.1} parent=1 // loop_exit
      _
    %589 = vsyncpa [#allocation3], 1
    %s590 = scalar_lea.sflag [#allocation3], 1
    %591 = vsyncpa %s590, 1

</llo_original>
